<compile_context>
chip_gen: v7x
topology: tpu7x:2x2x1
jax: 0.10.0
libtpu: 0.0.40
codegen_flags: <defaults>
</compile_context>

<pallas_src>
import functools

import jax
import jax.numpy as jnp
from jax import lax
from jax.experimental import pallas as pl
from jax.experimental.pallas import tpu as pltpu

_TILE_BYTES = 2 * 1024 * 1024          # ~2 MiB of f32 per input buffer per tile
_LANE_CANDIDATES = (1024, 512, 256, 128)
_VMEM_LIMIT_BYTES = 32 * 1024 * 1024   # covers the <=12 MiB double-buffered set


def _choose_tiling(n):
    """Pick (lanes, block_rows, rows_padded) for a flat array of n elements."""
    lanes = 512
    for cand in _LANE_CANDIDATES:
        if n % cand == 0:
            lanes = cand
            break
    rows = -(-n // lanes)                                   # cdiv
    max_rows = max(8, (_TILE_BYTES // (4 * lanes)) // 8 * 8)
    if rows <= max_rows:
        # Fits in one tile.  If comfortably large, split into 2-4 grid steps so
        # the DMA pipeline and both v7x TensorCores have work (no row padding).
        if rows % 8 == 0 and rows >= 32:
            for steps in (4, 2):
                if rows % (8 * steps) == 0:
                    return lanes, rows // steps, rows
        return lanes, rows, rows
    # Many tiles: prefer a multiple-of-8 divisor of `rows` (avoids a wrapper
    # row-padding copy); otherwise pad rows up to a multiple of max_rows.
    min_rows = max(8, max_rows // 8)
    for d in range(max_rows, min_rows - 1, -8):
        if rows % d == 0:
            return lanes, d, rows
    return lanes, max_rows, -(-rows // max_rows) * max_rows


def _focal_pow(omp, gamma):
    """(1 - pt)**gamma specialized on the compile-time gamma: small integers ->
    repeated multiply, half-integers -> sqrt + multiplies (avoids jnp.power's
    log+exp EUP pair in the common cases)."""
    g = float(gamma)
    if g == 0.0:
        return jnp.ones_like(omp)
    if g == int(g) and 1 <= int(g) <= 4:
        out = omp
        for _ in range(int(g) - 1):
            out = out * omp
        return out
    if 2 * g == int(2 * g) and 0 < g <= 4.5:
        half = jnp.sqrt(omp)
        out = half
        for _ in range(int(2 * g) - 1):
            out = out * half
        return out
    return jnp.power(omp, jnp.float32(g))


def _focal_core(x_ref, t_ref, gamma):
    """Shared elementwise core. Returns (t_f32, 2*(1-pt)^gamma*bce) in f32."""
    x = x_ref[...].astype(jnp.float32)
    t = t_ref[...].astype(jnp.float32)
    # Numerically-stable BCE-with-logits: max(x,0) - x*t + log1p(exp(-|x|))
    bce = jnp.maximum(x, 0.0) - x * t + jnp.log1p(jnp.exp(-jnp.abs(x)))
    pt = jnp.exp(-bce)            # identical to the reference (soft targets OK)
    core = 2.0 * _focal_pow(1.0 - pt, gamma) * bce
    return t, core


def _focal_none_kernel(a_ref, x_ref, t_ref, out_ref, *, gamma):
    t, core = _focal_core(x_ref, t_ref, gamma)
    a = a_ref[0, 0]                           # alpha or prob_pos (SMEM scalar)
    at = t * a + (1.0 - t) * (1.0 - a)
    out_ref[...] = (at * core).astype(out_ref.dtype)


def _focal_mean_kernel(x_ref, t_ref, spos_ref, sneg_ref, st_ref, *, gamma):
    t, core = _focal_core(x_ref, t_ref, gamma)
    pos = core * t
    neg = core - pos                          # == core * (1 - t)
    block_rows, lanes = x_ref.shape

    def fold(v):
        # Reduce (block_rows, lanes) -> (8, lanes) per-lane partial sums.
        if block_rows % 8 == 0:
            # Group-of-8 sublane fold: pure VALU adds across vregs.
            return jnp.sum(v.reshape(block_rows // 8, 8, lanes), axis=0)
        row = jnp.sum(v, axis=0, keepdims=True)
        sub = lax.broadcasted_iota(jnp.int32, (8, lanes), 0)
        return jnp.where(sub == 0, jnp.broadcast_to(row, (8, lanes)),
                         jnp.zeros((8, lanes), jnp.float32))

    spos_ref[...] = fold(pos)
    sneg_ref[...] = fold(neg)
    st_ref[...] = fold(t)


def focal_loss(logits, targets, *, gamma=1.0, alpha=0.5,
               dynamic_balance=False, reduction="mean"):
    """JAX/Pallas equivalent of FocalLoss.forward (targets_i in {0, 1})."""
    if reduction not in {"mean", "none"}:
        raise ValueError(f"wrong reduction type {reduction}")

    orig_shape = logits.shape
    n = int(logits.size)
    if n == 0:                                 # torch: mean of empty -> nan
        if reduction == "mean":
            return jnp.float32(jnp.nan)
        return jnp.zeros(orig_shape, logits.dtype)

    lanes, block_rows, rows_padded = _choose_tiling(n)
    n_padded = rows_padded * lanes
    num_tiles = rows_padded // block_rows
    grid = (num_tiles,)

    x_flat = logits.reshape(-1)
    t_flat = targets.reshape(-1)
    if n_padded != n:
        # Pad the ragged tail with a large-negative logit / zero target: padded
        # elements contribute (numerically) zero loss and zero sum(t), so no
        # in-kernel mask is needed.
        x_flat = jnp.pad(x_flat, (0, n_padded - n), constant_values=-100.0)
        t_flat = jnp.pad(t_flat, (0, n_padded - n))
    x2 = x_flat.reshape(rows_padded, lanes)
    t2 = t_flat.reshape(rows_padded, lanes)

    gamma = float(gamma)
    tile_spec = pl.BlockSpec((block_rows, lanes), lambda i: (i, 0))
    in_bytes = n_padded * (jnp.dtype(x2.dtype).itemsize +
                           jnp.dtype(t2.dtype).itemsize)
    compiler_params = pltpu.CompilerParams(
        dimension_semantics=("parallel",),
        vmem_limit_bytes=_VMEM_LIMIT_BYTES,
    )

    if reduction == "mean":
        part_shape = jax.ShapeDtypeStruct((num_tiles * 8, lanes), jnp.float32)
        part_spec = pl.BlockSpec((8, lanes), lambda i: (i, 0))
        out_bytes = 3 * num_tiles * 8 * lanes * 4
        spos, sneg, st = pl.pallas_call(
            functools.partial(_focal_mean_kernel, gamma=gamma),
            out_shape=(part_shape, part_shape, part_shape),
            grid_spec=pltpu.PrefetchScalarGridSpec(
                num_scalar_prefetch=0,
                grid=grid,
                in_specs=[tile_spec, tile_spec],
                out_specs=[part_spec, part_spec, part_spec],
            ),
            compiler_params=compiler_params,
            cost_estimate=pl.CostEstimate(
                flops=20 * n_padded, transcendentals=4 * n_padded,
                bytes_accessed=in_bytes + out_bytes),
        )(x2, t2)
        s_pos = jnp.sum(spos)
        s_neg = jnp.sum(sneg)
        if dynamic_balance:
            a = jnp.sum(st) / jnp.float32(n)   # prob_pos, fused into the kernel
        else:
            a = jnp.float32(alpha)
        # loss is linear in the class-balance weight a, so combine outside.
        return (a * s_pos + (1.0 - a) * s_neg) / jnp.float32(n)

    # reduction == 'none'
    if dynamic_balance:
        # TODO(synk): for reduction='none' the class-balance statistic still
        # needs one wrapper-side pass over `targets` before the elementwise kernel.
        a_scalar = jnp.mean(targets.astype(jnp.float32)).reshape(1, 1)
    else:
        a_scalar = jnp.full((1, 1), alpha, dtype=jnp.float32)

    out_dtype = logits.dtype                   # write loss in the input dtype
    out_bytes = n_padded * jnp.dtype(out_dtype).itemsize
    out = pl.pallas_call(
        functools.partial(_focal_none_kernel, gamma=gamma),
        out_shape=jax.ShapeDtypeStruct((rows_padded, lanes), out_dtype),
        grid_spec=pltpu.PrefetchScalarGridSpec(
            num_scalar_prefetch=0,
            grid=grid,
            in_specs=[pl.BlockSpec(memory_space=pltpu.MemorySpace.SMEM),
                      tile_spec, tile_spec],
            out_specs=tile_spec,
        ),
        compiler_params=compiler_params,
        cost_estimate=pl.CostEstimate(
            flops=20 * n_padded, transcendentals=4 * n_padded,
            bytes_accessed=in_bytes + out_bytes),
    )(a_scalar, x2, t2)
    if n_padded == n:
        return out.reshape(orig_shape)         # no post-kernel slice copy
    return out.reshape(-1)[:n].reshape(orig_shape)


def _focal_loss_ref(logits, targets, *, gamma=1.0, alpha=0.5,
                    dynamic_balance=False, reduction="mean"):
    """Pure-JAX reference for correctness checking."""
    x = logits.astype(jnp.float32)
    t = targets.astype(jnp.float32)
    bce = jnp.maximum(x, 0.0) - x * t + jnp.log1p(jnp.exp(-jnp.abs(x)))
    pt = jnp.exp(-bce)
    if dynamic_balance:
        prob_pos = jnp.mean(t)
        at = t * prob_pos + (1.0 - t) * (1.0 - prob_pos)
    else:
        at = t * alpha + (1.0 - t) * (1.0 - alpha)
    loss = 2.0 * at * jnp.power(1.0 - pt, gamma) * bce
    return jnp.mean(loss) if reduction == "mean" else loss


if __name__ == "__main__":
    key = jax.random.PRNGKey(0)
    k1, k2, k3, k4, k5, k6 = jax.random.split(key, 6)

    def check(name, got, want, rtol, atol=1e-6):
        got = jax.block_until_ready(got)
        assert jnp.allclose(got, want, rtol=rtol, atol=atol), (name, got, want)

    # Case 1: small (N, C) logits/targets, default config (static alpha, mean).
    logits1 = jax.random.normal(k1, (8, 32), dtype=jnp.float32) * 2.0
    targets1 = jax.random.bernoulli(k2, p=0.3, shape=(8, 32)).astype(jnp.float32)
    check("mean/static",
          focal_loss(logits1, targets1, gamma=1.0, alpha=0.5, reduction="mean"),
          _focal_loss_ref(logits1, targets1, gamma=1.0, alpha=0.5, reduction="mean"),
          rtol=1e-5)

    # Case 2: reduction='none', gamma=2 (specialized), dynamic_balance.
    check("none/dynamic",
          focal_loss(logits1, targets1, gamma=2.0, alpha=0.25,
                     dynamic_balance=True, reduction="none"),
          _focal_loss_ref(logits1, targets1, gamma=2.0, alpha=0.25,
                          dynamic_balance=True, reduction="none"),
          rtol=1e-5)

    # Case 3: ragged size (exercises the pad-with--100 path), half-integer gamma.
    logits2 = jax.random.normal(k3, (7, 9), dtype=jnp.float32) * 3.0
    targets2 = jax.random.bernoulli(k4, p=0.5, shape=(7, 9)).astype(jnp.float32)
    check("mean/ragged/dynamic",
          focal_loss(logits2, targets2, gamma=1.5, alpha=0.25,
                     dynamic_balance=True, reduction="mean"),
          _focal_loss_ref(logits2, targets2, gamma=1.5, alpha=0.25,
                          dynamic_balance=True, reduction="mean"),
          rtol=1e-4)

    # Case 4: lane-aligned input that splits into a 4-step parallel grid
    # (no wrapper pad/slice copies, multi-tile mean partials).
    logits3 = jax.random.normal(k5, (32, 1024), dtype=jnp.float32) * 2.0
    targets3 = jax.random.bernoulli(k6, p=0.4, shape=(32, 1024)).astype(jnp.float32)
    check("mean/multitile",
          focal_loss(logits3, targets3, gamma=2.0, alpha=0.25, reduction="mean"),
          _focal_loss_ref(logits3, targets3, gamma=2.0, alpha=0.25, reduction="mean"),
          rtol=1e-4)
    check("none/multitile",
          focal_loss(logits3, targets3, gamma=0.0, alpha=0.75, reduction="none"),
          _focal_loss_ref(logits3, targets3, gamma=0.0, alpha=0.75, reduction="none"),
          rtol=1e-5)

    print("KERNEL_OK")
</pallas_src>

<mosaic_0001>
module attributes {stable_mosaic.version = 11 : i64} {
  func.func @_focal_mean_kernel(%arg0: i32, %arg1: memref<1x256xf32, #tpu.memory_space<vmem>>, %arg2: memref<1x256xf32, #tpu.memory_space<vmem>>, %arg3: memref<8x256xf32, #tpu.memory_space<vmem>>, %arg4: memref<8x256xf32, #tpu.memory_space<vmem>>, %arg5: memref<8x256xf32, #tpu.memory_space<vmem>>) attributes {dimension_semantics = [#tpu.dimension_semantics<parallel>], iteration_bounds = array<i64: 1>, scalar_prefetch = 0 : i64, scratch_operands = 0 : i64, tpu.core_type = #tpu.core_type<tc>, window_params = [{transform_indices = @transform_0, window_bounds = array<i64: 1, 256>}, {transform_indices = @transform_1, window_bounds = array<i64: 1, 256>}, {transform_indices = @transform_2, window_bounds = array<i64: 8, 256>}, {transform_indices = @transform_3, window_bounds = array<i64: 8, 256>}, {transform_indices = @transform_4, window_bounds = array<i64: 8, 256>}]} {
    %c0 = arith.constant 0 : index
    %c0_0 = arith.constant 0 : index
    %0 = vector.load %arg1[%c0, %c0_0] : memref<1x256xf32, #tpu.memory_space<vmem>>, vector<1x256xf32>
    %c0_1 = arith.constant 0 : index
    %c0_2 = arith.constant 0 : index
    %1 = vector.load %arg2[%c0_1, %c0_2] : memref<1x256xf32, #tpu.memory_space<vmem>>, vector<1x256xf32>
    %cst = arith.constant 0.000000e+00 : f32
    %2 = vector.broadcast %cst : f32 to vector<1x256xf32>
    %3 = arith.maximumf %0, %2 : vector<1x256xf32>
    %4 = arith.mulf %0, %1 : vector<1x256xf32>
    %5 = arith.subf %3, %4 : vector<1x256xf32>
    %6 = math.absf %0 : vector<1x256xf32>
    %cst_3 = arith.constant 0.000000e+00 : f32
    %7 = vector.broadcast %cst_3 : f32 to vector<1x256xf32>
    %8 = arith.subf %7, %6 : vector<1x256xf32>
    %9 = math.exp %8 : vector<1x256xf32>
    %10 = math.log1p %9 : vector<1x256xf32>
    %11 = arith.addf %5, %10 : vector<1x256xf32>
    %cst_4 = arith.constant 0.000000e+00 : f32
    %12 = vector.broadcast %cst_4 : f32 to vector<1x256xf32>
    %13 = arith.subf %12, %11 : vector<1x256xf32>
    %14 = math.exp %13 : vector<1x256xf32>
    %cst_5 = arith.constant 1.000000e+00 : f32
    %15 = vector.broadcast %cst_5 : f32 to vector<1x256xf32>
    %16 = arith.subf %15, %14 : vector<1x256xf32>
    %cst_6 = arith.constant 2.000000e+00 : f32
    %17 = vector.broadcast %cst_6 : f32 to vector<1x256xf32>
    %18 = arith.mulf %17, %16 : vector<1x256xf32>
    %19 = arith.mulf %18, %11 : vector<1x256xf32>
    %20 = arith.mulf %19, %1 : vector<1x256xf32>
    %21 = arith.subf %19, %20 : vector<1x256xf32>
    %cst_7 = arith.constant dense<0.000000e+00> : vector<256xf32>
    %22 = vector.multi_reduction <add>, %20, %cst_7 [0] : vector<1x256xf32> to vector<256xf32>
    %23 = vector.shape_cast %22 : vector<256xf32> to vector<1x256xf32>
    %24 = tpu.iota {dimensions = array<i32: 0>} : vector<8x256xi32>
    %c0_i32 = arith.constant 0 : i32
    %25 = vector.broadcast %c0_i32 : i32 to vector<8x256xi32>
    %26 = arith.cmpi eq, %24, %25 : vector<8x256xi32>
    %27 = vector.shape_cast %23 : vector<1x256xf32> to vector<1x256xf32>
    %28 = vector.broadcast %27 : vector<1x256xf32> to vector<8x256xf32>
    %cst_8 = arith.constant 0.000000e+00 : f32
    %29 = vector.broadcast %cst_8 : f32 to vector<8x256xf32>
    %30 = arith.select %26, %28, %29 : vector<8x256xi1>, vector<8x256xf32>
    %c0_9 = arith.constant 0 : index
    %c0_10 = arith.constant 0 : index
    %31 = vector.load %arg3[%c0_9, %c0_10] : memref<8x256xf32, #tpu.memory_space<vmem>>, vector<8x256xf32>
    tpu.vector_store %arg3[%c0_9, %c0_10], %30 {strides = array<i32>} : memref<8x256xf32, #tpu.memory_space<vmem>>, vector<8x256xf32>,
    %cst_11 = arith.constant dense<0.000000e+00> : vector<256xf32>
    %32 = vector.multi_reduction <add>, %21, %cst_11 [0] : vector<1x256xf32> to vector<256xf32>
    %33 = vector.shape_cast %32 : vector<256xf32> to vector<1x256xf32>
    %34 = tpu.iota {dimensions = array<i32: 0>} : vector<8x256xi32>
    %c0_i32_12 = arith.constant 0 : i32
    %35 = vector.broadcast %c0_i32_12 : i32 to vector<8x256xi32>
    %36 = arith.cmpi eq, %34, %35 : vector<8x256xi32>
    %37 = vector.shape_cast %33 : vector<1x256xf32> to vector<1x256xf32>
    %38 = vector.broadcast %37 : vector<1x256xf32> to vector<8x256xf32>
    %cst_13 = arith.constant 0.000000e+00 : f32
    %39 = vector.broadcast %cst_13 : f32 to vector<8x256xf32>
    %40 = arith.select %36, %38, %39 : vector<8x256xi1>, vector<8x256xf32>
    %c0_14 = arith.constant 0 : index
    %c0_15 = arith.constant 0 : index
    %41 = vector.load %arg4[%c0_14, %c0_15] : memref<8x256xf32, #tpu.memory_space<vmem>>, vector<8x256xf32>
    tpu.vector_store %arg4[%c0_14, %c0_15], %40 {strides = array<i32>} : memref<8x256xf32, #tpu.memory_space<vmem>>, vector<8x256xf32>,
    %cst_16 = arith.constant dense<0.000000e+00> : vector<256xf32>
    %42 = vector.multi_reduction <add>, %1, %cst_16 [0] : vector<1x256xf32> to vector<256xf32>
    %43 = vector.shape_cast %42 : vector<256xf32> to vector<1x256xf32>
    %44 = tpu.iota {dimensions = array<i32: 0>} : vector<8x256xi32>
    %c0_i32_17 = arith.constant 0 : i32
    %45 = vector.broadcast %c0_i32_17 : i32 to vector<8x256xi32>
    %46 = arith.cmpi eq, %44, %45 : vector<8x256xi32>
    %47 = vector.shape_cast %43 : vector<1x256xf32> to vector<1x256xf32>
    %48 = vector.broadcast %47 : vector<1x256xf32> to vector<8x256xf32>
    %cst_18 = arith.constant 0.000000e+00 : f32
    %49 = vector.broadcast %cst_18 : f32 to vector<8x256xf32>
    %50 = arith.select %46, %48, %49 : vector<8x256xi1>, vector<8x256xf32>
    %c0_19 = arith.constant 0 : index
    %c0_20 = arith.constant 0 : index
    %51 = vector.load %arg5[%c0_19, %c0_20] : memref<8x256xf32, #tpu.memory_space<vmem>>, vector<8x256xf32>
    tpu.vector_store %arg5[%c0_19, %c0_20], %50 {strides = array<i32>} : memref<8x256xf32, #tpu.memory_space<vmem>>, vector<8x256xf32>,
    return
  }
  func.func @transform_0(%arg0: i32) -> (i32, i32) {
    %c0_i32 = arith.constant 0 : i32
    %c0_i32_0 = arith.constant 0 : i32
    return %arg0, %c0_i32 : i32, i32
  }
  func.func @transform_1(%arg0: i32) -> (i32, i32) {
    %c0_i32 = arith.constant 0 : i32
    %c0_i32_0 = arith.constant 0 : i32
    return %arg0, %c0_i32 : i32, i32
  }
  func.func @transform_2(%arg0: i32) -> (i32, i32) {
    %c0_i32 = arith.constant 0 : i32
    %c0_i32_0 = arith.constant 0 : i32
    return %arg0, %c0_i32 : i32, i32
  }
  func.func @transform_3(%arg0: i32) -> (i32, i32) {
    %c0_i32 = arith.constant 0 : i32
    %c0_i32_0 = arith.constant 0 : i32
    return %arg0, %c0_i32 : i32, i32
  }
  func.func @transform_4(%arg0: i32) -> (i32, i32) {
    %c0_i32 = arith.constant 0 : i32
    %c0_i32_0 = arith.constant 0 : i32
    return %arg0, %c0_i32 : i32, i32
  }
}

</mosaic_0001>

<llo_original>
// kernel: tpu_custom_call.1
$region0: #{tpu_custom_call.1}
  #allocation0 [shape = 'u32[]', space=smem, size = 0x4, offset = 0x4, fixed_abs, tag = 'smem constant byte address 0x4 - core index']
  #allocation1 [shape = 'u32[144,128]{1,0:T(1,128)}', space=vmem, size = 0x12000, scoped, tag = 'internal scratch']
  %s0 = inlined_call_operand.hbm [shape: f32[1,256], index: 0, kind: input, shape index: {}]
  %s1 = inlined_call_operand.vmem [shape: f32[1,256], index: 1, kind: input, shape index: {}]
  %s2 = inlined_call_operand.hbm [shape: f32[8,256], index: 2, kind: output, shape index: {0}]
  %s3 = inlined_call_operand.hbm [shape: f32[8,256], index: 3, kind: output, shape index: {1}]
  %s4 = inlined_call_operand.hbm [shape: f32[8,256], index: 4, kind: output, shape index: {2}]
  %5 = xla_tuple %s2, %s3, %s4
  %s6 = sld [smem:[#allocation0]]
  $region38: #{tpu_custom_call.1} parent=0
    _
  %s8 = ssub.s32 1, %s6
  %s9 = scalar_select 0, %s8, %s6
  $region1: #{tpu_custom_call.1} parent=0
    #allocation2 [shape = 'u8[1024]{0}', space=vmem, size = 0x400, scoped, tag = 'input window, operand 0, single buffered']
    #allocation3 [shape = 's32[1]{0}', space=sflag, size = 0x4, scoped, tag = 'scoped memory for tpu_custom_call.1']
    #allocation4 [shape = 's32[1]{0}', space=sflag, size = 0x4, scoped, tag = 'scoped memory for tpu_custom_call.1']
    #allocation5 [shape = 'u8[8192]{0}', space=vmem, size = 0x2000, scoped, tag = 'output window, operand 0, single buffered']
    #allocation6 [shape = 'u8[8192]{0}', space=vmem, size = 0x2000, scoped, tag = 'output window, operand 1, single buffered']
    #allocation7 [shape = 's32[1]{0}', space=sflag, size = 0x4, scoped, tag = 'scoped memory for tpu_custom_call.1']
    #allocation8 [shape = 'u8[8192]{0}', space=vmem, size = 0x2000, scoped, tag = 'output window, operand 2, single buffered']
    %10 = vsyncpa [#allocation3], 0
    %11 = vsyncpa [#allocation4], 0
    %12 = vsyncpa [#allocation7], 0
    // Predicated region
    $region2: #{tpu_custom_call.1} parent=1 // pred_check
      _
    $region3: #{tpu_custom_call.1} parent=1 // pred_check_branch
      %14 = sbr.rel (0) target = $region5
    $region4: #{tpu_custom_call.1} parent=1 // pred_region
      %s16 = ssub.s32 32, 32
      %17 = vsyncadd [#allocation3], %s16
      %s19 = sshll.u32 [#allocation2], 4
      %s20 = int_to_ptr.vmem [resolvable:$true] %s19
      %22 = dma.hbm_to_vmem [thread:$0]  %s0, 32, %s20, [#allocation3]
    $region5: #{tpu_custom_call.1} parent=1 // pred_fallthru
      _
    // Predicated region
    $region6: #{tpu_custom_call.1} parent=1 // pred_check
      _
    $region7: #{tpu_custom_call.1} parent=1 // pred_check_branch
      %24 = sbr.rel (0) target = $region9
    $region8: #{tpu_custom_call.1} parent=1 // pred_region
      _
    $region9: #{tpu_custom_call.1} parent=1 // pred_fallthru
      _
    // Predicated region
    $region10: #{tpu_custom_call.1} parent=1 // pred_check
      _
    $region11: #{tpu_custom_call.1} parent=1 // pred_check_branch
      %26 = sbr.rel (0) target = $region13
    $region12: #{tpu_custom_call.1} parent=1 // pred_region
      %27 = dma.done [#allocation3], 32
    $region13: #{tpu_custom_call.1} parent=1 // pred_fallthru
      _
    %v28 = vld [vmem:[#allocation2] sm:$0x3]
    %v29 = vld [vmem:[%s1] sm:$0x3]
    %v30 = vmax.f32 %v28, 0.0
    %v31 = vmul.f32 %v28, %v29
    %v32 = vsub.f32 %v30, %v31
    %v33 = vand.u32 2147483647, %v28
    %v34 = vsub.f32 0.0, %v33
    %v35 = vmul.f32 %v34, 1.442695
    %v36 = vpow.pop %v35
    %v37 = vadd.f32 %v36, 1.0
    %v38 = vlog2.pop %v37
    %v39 = vmul.f32 %v38, 0.6931472
    %v40 = vmul.f32 -0.5, %v36
    %v41 = vadd.f32 %v40, 1.0
    %v42 = vmul.f32 %v41, %v36
    %v43 = vand.u32 2147483647, %v36
    %vm44 = vcmp.lt.f32.partialorder %v43, 0.0004427343
    %v45 = vsel %vm44, %v42, %v39
    %v46 = vadd.f32 %v32, %v45
    %v47 = vsub.f32 0.0, %v46
    %v48 = vmul.f32 %v47, 1.442695
    %v49 = vpow.pop %v48
    %v50 = vsub.f32 1.0, %v49
    %v51 = vmul.f32 %v50, 2.0
    %v52 = vmul.f32 %v51, %v46
    %v53 = vmul.f32 %v52, %v29
    %v54 = vsub.f32 %v52, %v53
    %v55 = vadd.f32 %v53, 0.0
    %v56 = vlaneseq
    %v57 = vshrl.u32 %v56, 7
    %vm58 = vcmp.eq.s32.totalorder %v57, 0
    %v60 = vlaneseq
    %v61 = vshrl.u32 %v60, 7
    %v62 = vsub.s32 0, %v61
    %v63 = vrot.slane %v55, %v62
    %v64 = vlaneseq
    %v65 = vshrl.u32 %v64, 7
    %v66 = vsub.s32 1, %v65
    %v67 = vrot.slane %v55, %v66
    %v70 = vsel %vm58, %v63, 0.0
    %v71 = vsel %vm58, %v67, 0.0
    %72 = vst [vmem:[#allocation5] sm:$0xff] %v70
    %73 = vst [vmem:[#allocation5 + $0x8] sm:$0xff] %v71
    %v74 = vadd.f32 %v54, 0.0
    %v76 = vlaneseq
    %v77 = vshrl.u32 %v76, 7
    %v78 = vsub.s32 0, %v77
    %v79 = vrot.slane %v74, %v78
    %v80 = vlaneseq
    %v81 = vshrl.u32 %v80, 7
    %v82 = vsub.s32 1, %v81
    %v83 = vrot.slane %v74, %v82
    %v86 = vsel %vm58, %v79, 0.0
    %v87 = vsel %vm58, %v83, 0.0
    %88 = vst [vmem:[#allocation6] sm:$0xff] %v86
    %89 = vst [vmem:[#allocation6 + $0x8] sm:$0xff] %v87
    %v90 = vadd.f32 %v29, 0.0
    %v92 = vlaneseq
    %v93 = vshrl.u32 %v92, 7
    %v94 = vsub.s32 0, %v93
    %v95 = vrot.slane %v90, %v94
    %v96 = vlaneseq
    %v97 = vshrl.u32 %v96, 7
    %v98 = vsub.s32 1, %v97
    %v99 = vrot.slane %v90, %v98
    %v102 = vsel %vm58, %v95, 0.0
    %v103 = vsel %vm58, %v99, 0.0
    %104 = vst [vmem:[#allocation8] sm:$0xff] %v102
    %105 = vst [vmem:[#allocation8 + $0x8] sm:$0xff] %v103
    // Predicated region
    $region14: #{tpu_custom_call.1} parent=1 // pred_check
      _
    $region15: #{tpu_custom_call.1} parent=1 // pred_check_branch
      %107 = sbr.rel (0) target = $region17
    $region16: #{tpu_custom_call.1} parent=1 // pred_region
      %s109 = ssub.s32 256, 256
      %110 = vsyncadd [#allocation4], %s109
      %s112 = sshll.u32 [#allocation5], 4
      %s113 = int_to_ptr.vmem [resolvable:$true] %s112
      %115 = dma.vmem_to_hbm [thread:$0]  %s113, 256, %s2, [#allocation4]
    $region17: #{tpu_custom_call.1} parent=1 // pred_fallthru
      _
    // Predicated region
    $region18: #{tpu_custom_call.1} parent=1 // pred_check
      _
    $region19: #{tpu_custom_call.1} parent=1 // pred_check_branch
      %117 = sbr.rel (0) target = $region21
    $region20: #{tpu_custom_call.1} parent=1 // pred_region
      %s119 = ssub.s32 256, 256
      %120 = vsyncadd [#allocation7], %s119
      %s122 = sshll.u32 [#allocation6], 4
      %s123 = int_to_ptr.vmem [resolvable:$true] %s122
      %125 = dma.vmem_to_hbm [thread:$0]  %s123, 256, %s3, [#allocation7]
    $region21: #{tpu_custom_call.1} parent=1 // pred_fallthru
      _
    // Predicated region
    $region22: #{tpu_custom_call.1} parent=1 // pred_check
      _
    $region23: #{tpu_custom_call.1} parent=1 // pred_check_branch
      %127 = sbr.rel (0) target = $region25
    $region24: #{tpu_custom_call.1} parent=1 // pred_region
      %s129 = ssub.s32 256, 256
      %130 = vsyncadd [#allocation7], %s129
      %s132 = sshll.u32 [#allocation8], 4
      %s133 = int_to_ptr.vmem [resolvable:$true] %s132
      %135 = dma.vmem_to_hbm [thread:$0]  %s133, 256, %s4, [#allocation7]
    $region25: #{tpu_custom_call.1} parent=1 // pred_fallthru
      _
    // Predicated region
    $region26: #{tpu_custom_call.1} parent=1 // pred_check
      _
    $region27: #{tpu_custom_call.1} parent=1 // pred_check_branch
      %137 = sbr.rel (0) target = $region29
    $region28: #{tpu_custom_call.1} parent=1 // pred_region
      %138 = dma.done [#allocation4], 256
    $region29: #{tpu_custom_call.1} parent=1 // pred_fallthru
      _
    // Predicated region
    $region30: #{tpu_custom_call.1} parent=1 // pred_check
      _
    $region31: #{tpu_custom_call.1} parent=1 // pred_check_branch
      %140 = sbr.rel (0) target = $region33
    $region32: #{tpu_custom_call.1} parent=1 // pred_region
      %141 = dma.done [#allocation7], 256
    $region33: #{tpu_custom_call.1} parent=1 // pred_fallthru
      _
    // Predicated region
    $region34: #{tpu_custom_call.1} parent=1 // pred_check
      _
    $region35: #{tpu_custom_call.1} parent=1 // pred_check_branch
      %143 = sbr.rel (0) target = $region37
    $region36: #{tpu_custom_call.1} parent=1 // pred_region
      %144 = dma.done [#allocation7], 256
    $region37: #{tpu_custom_call.1} parent=1 // pred_fallthru
      _
    %145 = vsyncpa [#allocation3], 1
    %146 = vsyncpa [#allocation4], 1
    %147 = vsyncpa [#allocation7], 1

</llo_original>
